<compile_context>
chip_gen: v7x
topology: tpu7x:2x2x1
jax: 0.10.0
libtpu: 0.0.40
codegen_flags: <defaults>
</compile_context>

<pallas_src>
import functools
import math

import jax
import jax.numpy as jnp
from jax.experimental import pallas as pl
from jax.experimental.pallas import tpu as pltpu

_DEFAULT_BLOCK_BYTES = 2 * 1024 * 1024  # ~2 MiB per x block (double-buffered in+out ~8 MiB)
_MIN_GRID_STEPS = 4                     # keep >=2 blocks per TensorCore on v7x


def _sublane_granularity(itemsize: int) -> int:
    # Packed-sublane granularity: 8 rows for f32, 16 for bf16, 32 for i8/fp8.
    return max(8, 32 // max(1, itemsize))


def _divisor_tile(total: int, target: int, gran: int) -> int:
    """Largest multiple of `gran` <= target dividing `total`; else largest
    multiple of gran <= target (masked tail block)."""
    target = max(gran, (target // gran) * gran)
    if total <= target:
        return total
    for cand in range(target, gran - 1, -gran):
        if total % cand == 0:
            return cand
    return target


def _path_drop_kernel_folded(rand_ref, x_ref, o_ref, *, keep_prob):
    # rand_ref: (b_tile, 1, 1) float32 uniform[0,1) per sample.
    # x_ref/o_ref: (b_tile, r_tile, 128) tile of the folded input/output.
    mask = jnp.floor(jnp.float32(keep_prob) + rand_ref[...])   # 0.0 / 1.0, f32
    scale = mask * jnp.float32(1.0 / keep_prob)                # (b_tile,1,1) f32
    # Multiply in f32 (promotion), cast once at the store.
    o_ref[...] = (x_ref[...] * scale).astype(o_ref.dtype)


def _path_drop_kernel_rows(rand_ref, x_ref, o_ref, *, keep_prob):
    # rand_ref: (b_tile, 1) float32; x_ref/o_ref: (b_tile, tf).
    mask = jnp.floor(jnp.float32(keep_prob) + rand_ref[...])
    scale = mask * jnp.float32(1.0 / keep_prob)
    o_ref[...] = (x_ref[...] * scale).astype(o_ref.dtype)


def path_drop(x, rand_uniform, drop_prob: float = 0.0, training: bool = False,
              *, block_bytes: int = _DEFAULT_BLOCK_BYTES):
    """Pallas PathDrop.

    x:            (B, ...) float array (e.g. NCHW).
    rand_uniform: (B,) uniform[0,1) floats (plays the role of torch.rand).
    """
    if drop_prob == 0.0 or not training:
        return x
    if drop_prob >= 1.0:
        # keep_prob == 0 would give 0 * inf = NaN (same pathology as the
        # PyTorch reference); every sample is dropped, so return zeros.
        return jnp.zeros_like(x)

    keep_prob = 1.0 - drop_prob
    B = x.shape[0]
    F = int(math.prod(x.shape[1:]))
    itemsize = x.dtype.itemsize
    rand_f32 = rand_uniform.astype(jnp.float32)
    sub_gran = _sublane_granularity(itemsize)

    if F % 128 == 0:
        # ---- primary path: fold features into sublanes, lane dim = 128 ----
        R = F // 128
        x3 = x.reshape(B, R, 128)
        rand3 = rand_f32.reshape(B, 1, 1)

        bytes_per_row = 128 * itemsize
        bytes_per_sample = R * bytes_per_row

        if bytes_per_sample <= block_bytes:
            # Small per-sample footprint: pack multiple samples per block so
            # each block is ~block_bytes (HBM-contiguous since r_tile = R).
            b_tile = min(B, max(1, block_bytes // max(1, bytes_per_sample)))
            r_tile = R
        else:
            # Large per-sample footprint: tile features within one sample.
            b_tile = 1
            r_tile = _divisor_tile(R, block_bytes // bytes_per_row, sub_gran)

        nb, nr = pl.cdiv(B, b_tile), pl.cdiv(R, r_tile)
        # Ensure enough grid steps to feed both TensorCores on v7x.
        while nb * nr < _MIN_GRID_STEPS:
            if b_tile > 1:
                b_tile = max(1, b_tile // 2)
            elif r_tile > sub_gran:
                new_r = max(sub_gran, (r_tile // 2) // sub_gran * sub_gran)
                if new_r == r_tile:
                    break
                r_tile = new_r
            else:
                break
            nb, nr = pl.cdiv(B, b_tile), pl.cdiv(R, r_tile)
        # (If blocks shrink well below ~1 MiB here, a deeper pipeline via
        #  pl.Buffered(3) on the x input is a further tweak; omitted to keep
        #  the portable default double-buffering.)

        kernel = functools.partial(_path_drop_kernel_folded, keep_prob=keep_prob)
        out3 = pl.pallas_call(
            kernel,
            out_shape=jax.ShapeDtypeStruct((B, R, 128), x.dtype),
            grid_spec=pltpu.PrefetchScalarGridSpec(
                num_scalar_prefetch=0,
                grid=(nb, nr),
                in_specs=[
                    # Per-sample randoms for this batch tile (tiny f32 block).
                    pl.BlockSpec((b_tile, 1, 1), lambda bi, ri: (bi, 0, 0)),
                    # Input tile: lane-dense (b_tile, r_tile, 128) slab.
                    pl.BlockSpec((b_tile, r_tile, 128), lambda bi, ri: (bi, ri, 0)),
                ],
                out_specs=pl.BlockSpec((b_tile, r_tile, 128),
                                       lambda bi, ri: (bi, ri, 0)),
            ),
            compiler_params=pltpu.CompilerParams(
                dimension_semantics=("parallel", "parallel"),
            ),
        )(rand3, x3)
        return out3.reshape(x.shape)

    # ---- fallback path: F not a multiple of 128 ----
    x2 = x.reshape(B, F)
    rand2 = rand_f32.reshape(B, 1)
    bytes_per_row = F * itemsize

    if B * bytes_per_row <= block_bytes:
        b_tile, tf = B, F                       # whole tensor in one block
    elif 8 * bytes_per_row <= block_bytes:
        # Tile the batch only; keep rows whole (contiguous per-row DMA).
        b_tile = min(B, max(8, (block_bytes // bytes_per_row) // 8 * 8))
        tf = F
    else:
        # Rows are too large: tile features too (lane-aligned, masked tail).
        b_tile = 8 if B >= 8 else B
        tf = max(128, (block_bytes // (b_tile * itemsize)) // 128 * 128)
        tf = min(tf, pl.cdiv(F, 128) * 128)

    nb, nf = pl.cdiv(B, b_tile), pl.cdiv(F, tf)
    while nb * nf < _MIN_GRID_STEPS:
        if b_tile > 8:
            new_b = max(8, (b_tile // 2) // 8 * 8)
            if new_b == b_tile:
                break
            b_tile = new_b
        elif tf > 128 and tf % 128 == 0:
            new_tf = max(128, (tf // 2) // 128 * 128)
            if new_tf == tf:
                break
            tf = new_tf
        else:
            break
        nb, nf = pl.cdiv(B, b_tile), pl.cdiv(F, tf)

    kernel = functools.partial(_path_drop_kernel_rows, keep_prob=keep_prob)
    out2 = pl.pallas_call(
        kernel,
        out_shape=jax.ShapeDtypeStruct((B, F), x.dtype),
        grid_spec=pltpu.PrefetchScalarGridSpec(
            num_scalar_prefetch=0,
            grid=(nb, nf),
            in_specs=[
                pl.BlockSpec((b_tile, 1), lambda bi, fi: (bi, 0)),
                pl.BlockSpec((b_tile, tf), lambda bi, fi: (bi, fi)),
            ],
            out_specs=pl.BlockSpec((b_tile, tf), lambda bi, fi: (bi, fi)),
        ),
        compiler_params=pltpu.CompilerParams(
            dimension_semantics=("parallel", "parallel"),
        ),
    )(rand2, x2)
    return out2.reshape(x.shape)


class PathDrop:
    """JAX/Pallas mirror of the PyTorch PathDrop module (no learned params)."""

    def __init__(self, drop_prob=None):
        self.drop_prob = drop_prob
        self.training = True

    def __call__(self, x, key):
        dp = 0.0 if self.drop_prob is None else float(self.drop_prob)
        if dp == 0.0 or not self.training:
            return x
        # torch.rand equivalent: per-sample uniform[0,1), kept in float32.
        rand_uniform = jax.random.uniform(key, (x.shape[0],), dtype=jnp.float32)
        return path_drop(x, rand_uniform, drop_prob=dp, training=self.training)


def _reference(x, rand_uniform, drop_prob):
    keep_prob = 1.0 - drop_prob
    shape = (x.shape[0],) + (1,) * (x.ndim - 1)
    mask = jnp.floor(keep_prob + rand_uniform.astype(jnp.float32)).reshape(shape)
    return (x.astype(jnp.float32) / keep_prob * mask).astype(x.dtype)


if __name__ == "__main__":
    key = jax.random.PRNGKey(0)
    k_x, k_drop, k_x2, k_x3 = jax.random.split(key, 4)
    drop_prob = 0.3
    keep_prob = 1.0 - drop_prob

    # ---- primary path (F % 128 == 0), f32 NCHW ----
    B, C, H, W = 2, 4, 16, 16
    x = jax.random.normal(k_x, (B, C, H, W), dtype=jnp.float32)
    rand_u = jax.random.uniform(k_drop, (B,), dtype=jnp.float32)
    out = jax.block_until_ready(path_drop(x, rand_u, drop_prob=drop_prob, training=True))
    ref = _reference(x, rand_u, drop_prob)
    assert out.shape == x.shape and out.dtype == x.dtype
    assert jnp.allclose(out, ref, atol=1e-6, rtol=1e-5), float(jnp.max(jnp.abs(out - ref)))

    # ---- primary path, bf16 (f32-scale multiply, cast at the store) ----
    xb = jax.random.normal(k_x2, (4, 8, 8, 16), dtype=jnp.bfloat16)
    rand_b = jax.random.uniform(k_drop, (4,), dtype=jnp.float32)
    out_b = jax.block_until_ready(path_drop(xb, rand_b, drop_prob=drop_prob, training=True))
    ref_b = _reference(xb, rand_b, drop_prob)
    assert out_b.shape == xb.shape and out_b.dtype == xb.dtype
    assert jnp.allclose(out_b.astype(jnp.float32), ref_b.astype(jnp.float32),
                        atol=1e-2, rtol=1e-2)

    # ---- fallback path (F % 128 != 0) ----
    xf = jax.random.normal(k_x3, (3, 5, 7, 11), dtype=jnp.float32)
    rand_f = jax.random.uniform(k_drop, (3,), dtype=jnp.float32)
    out_f = jax.block_until_ready(path_drop(xf, rand_f, drop_prob=drop_prob, training=True))
    ref_f = _reference(xf, rand_f, drop_prob)
    assert out_f.shape == xf.shape and out_f.dtype == xf.dtype
    assert jnp.allclose(out_f, ref_f, atol=1e-6, rtol=1e-5)

    # ---- module wrapper: training / eval / drop_prob=1.0 behavior ----
    module = PathDrop(drop_prob=drop_prob)
    module.training = True
    out_m = jax.block_until_ready(module(x, k_drop))
    assert out_m.shape == x.shape and out_m.dtype == x.dtype

    module.training = False
    out_eval = jax.block_until_ready(module(x, k_drop))
    assert jnp.array_equal(out_eval, x)

    out_all_drop = path_drop(x, rand_u, drop_prob=1.0, training=True)
    assert jnp.array_equal(out_all_drop, jnp.zeros_like(x))

    print("KERNEL_OK")
</pallas_src>

<mosaic_0001>
module attributes {stable_mosaic.version = 11 : i64} {
  func.func @_path_drop_kernel_folded(%arg0: i32, %arg1: i32, %arg2: memref<1x1x1xf32, #tpu.memory_space<vmem>>, %arg3: memref<1x8x128xf32, #tpu.memory_space<vmem>>, %arg4: memref<1x8x128xf32, #tpu.memory_space<vmem>>) attributes {dimension_semantics = [#tpu.dimension_semantics<parallel>, #tpu.dimension_semantics<parallel>], iteration_bounds = array<i64: 2, 1>, scalar_prefetch = 0 : i64, scratch_operands = 0 : i64, tpu.core_type = #tpu.core_type<tc>, window_params = [{transform_indices = @transform_0, window_bounds = array<i64: 1, 1, 1>}, {transform_indices = @transform_1, window_bounds = array<i64: 1, 8, 128>}, {transform_indices = @transform_2, window_bounds = array<i64: 1, 8, 128>}]} {
    %c0 = arith.constant 0 : index
    %c0_0 = arith.constant 0 : index
    %c0_1 = arith.constant 0 : index
    %0 = vector.load %arg2[%c0, %c0_0, %c0_1] : memref<1x1x1xf32, #tpu.memory_space<vmem>>, vector<1x1x1xf32>
    %cst = arith.constant 0.699999988 : f32
    %1 = vector.broadcast %cst : f32 to vector<1x1x1xf32>
    %2 = arith.addf %1, %0 : vector<1x1x1xf32>
    %3 = math.floor %2 : vector<1x1x1xf32>
    %cst_2 = arith.constant 1.42857146 : f32
    %4 = vector.broadcast %cst_2 : f32 to vector<1x1x1xf32>
    %5 = arith.mulf %3, %4 : vector<1x1x1xf32>
    %c0_3 = arith.constant 0 : index
    %c0_4 = arith.constant 0 : index
    %c0_5 = arith.constant 0 : index
    %6 = vector.load %arg3[%c0_3, %c0_4, %c0_5] : memref<1x8x128xf32, #tpu.memory_space<vmem>>, vector<1x8x128xf32>
    %7 = vector.broadcast %5 : vector<1x1x1xf32> to vector<1x8x128xf32>
    %8 = arith.mulf %6, %7 : vector<1x8x128xf32>
    %c0_6 = arith.constant 0 : index
    %c0_7 = arith.constant 0 : index
    %c0_8 = arith.constant 0 : index
    %9 = vector.load %arg4[%c0_6, %c0_7, %c0_8] : memref<1x8x128xf32, #tpu.memory_space<vmem>>, vector<1x8x128xf32>
    tpu.vector_store %arg4[%c0_6, %c0_7, %c0_8], %8 {strides = array<i32>} : memref<1x8x128xf32, #tpu.memory_space<vmem>>, vector<1x8x128xf32>,
    return
  }
  func.func @transform_0(%arg0: i32, %arg1: i32) -> (i32, i32, i32) {
    %c0_i32 = arith.constant 0 : i32
    %c0_i32_0 = arith.constant 0 : i32
    %c0_i32_1 = arith.constant 0 : i32
    return %arg0, %c0_i32, %c0_i32_0 : i32, i32, i32
  }
  func.func @transform_1(%arg0: i32, %arg1: i32) -> (i32, i32, i32) {
    %c0_i32 = arith.constant 0 : i32
    %c0_i32_0 = arith.constant 0 : i32
    return %arg0, %arg1, %c0_i32 : i32, i32, i32
  }
  func.func @transform_2(%arg0: i32, %arg1: i32) -> (i32, i32, i32) {
    %c0_i32 = arith.constant 0 : i32
    %c0_i32_0 = arith.constant 0 : i32
    return %arg0, %arg1, %c0_i32 : i32, i32, i32
  }
}

</mosaic_0001>

<llo_original>
// kernel: tpu_custom_call.1
$region0: #{tpu_custom_call.1}
  #allocation0 [shape = 'u32[]', space=smem, size = 0x4, offset = 0x4, fixed_abs, tag = 'smem constant byte address 0x4 - core index']
  #allocation1 [shape = 'u32[144,128]{1,0:T(1,128)}', space=vmem, size = 0x12000, scoped, tag = 'internal scratch']
  %s0 = inlined_call_operand.vmem [shape: f32[2,1,1], index: 0, kind: input, shape index: {}]
  %s1 = inlined_call_operand.hbm [shape: f32[2,8,128], index: 1, kind: input, shape index: {}]
  %s2 = inlined_call_operand.hbm [shape: f32[2,8,128], index: 2, kind: output, shape index: {}]
  %s3 = sld [smem:[#allocation0]]
  $region45: #{tpu_custom_call.1} parent=0
    _
  %s5 = ssub.s32 1, %s3
  %s6 = scalar_select 0, %s5, %s3
  $region1: #{tpu_custom_call.1} parent=0
    #allocation2 [shape = 'u8[8192]{0}', space=vmem, size = 0x2000, scoped, tag = 'input window, operand 1']
    #allocation3 [shape = 's32[2]{0}', space=sflag, size = 0x8, scoped, tag = 'scoped memory for tpu_custom_call.1']
    #allocation4 [shape = 's32[2]{0}', space=sflag, size = 0x8, scoped, tag = 'scoped memory for tpu_custom_call.1']
    #allocation5 [shape = 'u8[8192]{0}', space=vmem, size = 0x2000, scoped, tag = 'output window, operand 0']
    %7 = vsyncpa [#allocation3], 0
    %s8 = scalar_lea.sflag [#allocation3], 1
    %9 = vsyncpa %s8, 0
    %10 = vsyncpa [#allocation4], 0
    %s11 = scalar_lea.sflag [#allocation4], 1
    %12 = vsyncpa %s11, 0
    loop: start=0, step=1, limit=4
    $region2: #{tpu_custom_call.1} parent=1 // loop_pre_header
      _
    $region3: #{tpu_custom_call.1} parent=1 // loop_header
      %s14 = sphi 0, %s18
      %p15 = scmp.ge.s32.totalorder %s14, 4
      %s21 = sphi 0, %s33
      %s22 = sphi 0, %s29
      %s23 = sphi 0, %s21
      %s24 = sphi 0, %s22
      %s25 = sphi 0, %s23
      %s26 = sphi 0, %s24
      %s36 = sphi 0, %s38
      %s39 = sphi 0, %s36
      %s40 = sphi 0, %s39
      %s56 = sphi 0, %s40
      %s64 = sphi 0, %s66
      %s67 = sphi 0, %s64
      %s68 = sphi 0, %s67
      %s84 = sphi 0, %s68
      %s92 = sphi 0, %s94
      %s95 = sphi 0, %s92
      %s96 = sphi 0, %s95
      %s112 = sphi 0, %s96
    $region4: #{tpu_custom_call.1} parent=1 // loop_header_branch
      %17 = sbr.rel (%p15) target = $region8
    $region5: #{tpu_custom_call.1} parent=1 // loop_body
      %s19 = ssub.s32 %s14, 1
      %s20 = ssub.s32 %s14, 2
      %s27 = sadd.s32 1, %s22
      %p28 = scmp.ge.s32.totalorder %s27, 1
      %s29 = scalar_select %p28, 0, %s27
      %s30 = sadd.s32 1, %s21
      %s31 = scalar_select %p28, %s30, %s21
      %p32 = scmp.ge.s32.totalorder %s31, 2
      %s33 = scalar_select %p32, 0, %s31
      %s34 = ssub.s32 %s21, %s33
      %p35 = scmp.eq.s32.totalorder %s34, 0
      %s37 = sadd.s32 %s36, 1
      %s38 = scalar_select %p35, %s36, %s37
      %p41 = pneg %p35
      %p42 = scmp.eq.s32.totalorder %s14, 1
      %p43 = por %p41, %p42
      %p44 = scmp.ne.s32.totalorder %s36, %s39
      %p45 = scmp.eq.s32.totalorder %s14, 0
      %p46 = por %p44, %p45
      %p47 = scmp.ne.s32.totalorder %s36, %s39
      %p48 = scmp.eq.s32.totalorder %s19, 1
      %p49 = por %p47, %p48
      %p50 = scmp.ne.s32.totalorder %s39, %s40
      %p51 = scmp.eq.s32.totalorder %s19, 0
      %p52 = por %p50, %p51
      %p53 = scmp.ne.s32.totalorder %s39, %s40
      %p54 = scmp.eq.s32.totalorder %s20, 1
      %p55 = por %p53, %p54
      %p57 = scmp.ne.s32.totalorder %s40, %s56
      %p58 = scmp.eq.s32.totalorder %s20, 0
      %p59 = por %p57, %p58
      %s60 = ssub.s32 %s21, %s33
      %s61 = ssub.s32 %s22, %s29
      %s62 = sor.u32 %s60, %s61
      %p63 = scmp.eq.s32.totalorder %s62, 0
      %s65 = sadd.s32 %s64, 1
      %s66 = scalar_select %p63, %s64, %s65
      %p69 = pneg %p63
      %p70 = scmp.eq.s32.totalorder %s14, 1
      %p71 = por %p69, %p70
      %p72 = scmp.ne.s32.totalorder %s64, %s67
      %p73 = scmp.eq.s32.totalorder %s14, 0
      %p74 = por %p72, %p73
      %p75 = scmp.ne.s32.totalorder %s64, %s67
      %p76 = scmp.eq.s32.totalorder %s19, 1
      %p77 = por %p75, %p76
      %p78 = scmp.ne.s32.totalorder %s67, %s68
      %p79 = scmp.eq.s32.totalorder %s19, 0
      %p80 = por %p78, %p79
      %p81 = scmp.ne.s32.totalorder %s67, %s68
      %p82 = scmp.eq.s32.totalorder %s20, 1
      %p83 = por %p81, %p82
      %p85 = scmp.ne.s32.totalorder %s68, %s84
      %p86 = scmp.eq.s32.totalorder %s20, 0
      %p87 = por %p85, %p86
      %s88 = ssub.s32 %s21, %s33
      %s89 = ssub.s32 %s22, %s29
      %s90 = sor.u32 %s88, %s89
      %p91 = scmp.eq.s32.totalorder %s90, 0
      %s93 = sadd.s32 %s92, 1
      %s94 = scalar_select %p91, %s92, %s93
      %p97 = pneg %p91
      %p98 = scmp.eq.s32.totalorder %s14, 1
      %p99 = por %p97, %p98
      %p100 = scmp.ne.s32.totalorder %s92, %s95
      %p101 = scmp.eq.s32.totalorder %s14, 0
      %p102 = por %p100, %p101
      %p103 = scmp.ne.s32.totalorder %s92, %s95
      %p104 = scmp.eq.s32.totalorder %s19, 1
      %p105 = por %p103, %p104
      %p106 = scmp.ne.s32.totalorder %s95, %s96
      %p107 = scmp.eq.s32.totalorder %s19, 0
      %p108 = por %p106, %p107
      %p109 = scmp.ne.s32.totalorder %s95, %s96
      %p110 = scmp.eq.s32.totalorder %s20, 1
      %p111 = por %p109, %p110
      %p113 = scmp.ne.s32.totalorder %s96, %s112
      %p114 = scmp.eq.s32.totalorder %s20, 0
      %p115 = por %p113, %p114
      %p116 = scmp.le.s32.totalorder 1, %s14
      %p117 = scmp.lt.s32.totalorder %s14, 3
      %p118 = pnand %p116, %p117
      %p119 = pneg %p118
      // Predicated region
      $region9: #{tpu_custom_call.1} parent=5 // pred_check
        _
      $region10: #{tpu_custom_call.1} parent=5 // pred_check_branch
        %121 = sbr.rel (%p118) target = $region12
      $region11: #{tpu_custom_call.1} parent=5 // pred_region
        %s122 = ssub.s32 %s14, 1
      $region12: #{tpu_custom_call.1} parent=5 // pred_fallthru
        _
      %p123 = scmp.lt.s32.totalorder %s14, 2
      // Predicated region
      $region13: #{tpu_custom_call.1} parent=5 // pred_check
        %p124 = pneg %p123
      $region14: #{tpu_custom_call.1} parent=5 // pred_check_branch
        %126 = sbr.rel (%p124) target = $region16
      $region15: #{tpu_custom_call.1} parent=5 // pred_region
        // Predicated region
        $region17: #{tpu_custom_call.1} parent=15 // pred_check
          %p127 = pneg %p46
        $region18: #{tpu_custom_call.1} parent=15 // pred_check_branch
          %129 = sbr.rel (%p127) target = $region20
        $region19: #{tpu_custom_call.1} parent=15 // pred_region
          %p130 = scmp.lt.s32.totalorder %s21, 1
          %s131 = scalar_select %p130, %s21, 1
          %s132 = scalar_lea.vmem %s0, %s131
        $region20: #{tpu_custom_call.1} parent=15 // pred_fallthru
          _
        // Predicated region
        $region21: #{tpu_custom_call.1} parent=15 // pred_check
          %p133 = pneg %p74
        $region22: #{tpu_custom_call.1} parent=15 // pred_check_branch
          %135 = sbr.rel (%p133) target = $region24
        $region23: #{tpu_custom_call.1} parent=15 // pred_region
          %s136 = sand.u32 %s64, 1
          %s137 = scalar_lea.sflag [#allocation3], %s136
          %s138 = sand.u32 %s64, 1
          %s139 = smul.addr %s138, 8
          %s140 = scalar_lea.vmem [#allocation2], %s139
          %s142 = ssub.s32 128, 128
          %143 = vsyncadd %s137, %s142
          %s144 = sadd.s32 %s22, %s21
          %s145 = smul.addr %s144, 128
          %s146 = scalar_lea.hbm %s1, %s145
          %s148 = sshll.u32 %s140, 4
          %s149 = int_to_ptr.vmem [resolvable:$true] %s148
          %151 = dma.hbm_to_vmem [thread:$0]  %s146, 128, %s149, %s137
        $region24: #{tpu_custom_call.1} parent=15 // pred_fallthru
          _
      $region16: #{tpu_custom_call.1} parent=5 // pred_fallthru
        _
      %p152 = scmp.le.s32.totalorder 1, %s14
      %p153 = scmp.lt.s32.totalorder %s14, 3
      %p154 = pnand %p152, %p153
      %p155 = pneg %p154
      // Predicated region
      $region25: #{tpu_custom_call.1} parent=5 // pred_check
        _
      $region26: #{tpu_custom_call.1} parent=5 // pred_check_branch
        %157 = sbr.rel (%p154) target = $region28
      $region27: #{tpu_custom_call.1} parent=5 // pred_region
        %s158 = ssub.s32 %s14, 1
        %s159 = sand.u32 %s67, 1
        %s160 = scalar_lea.sflag [#allocation3], %s159
        %s161 = sand.u32 %s67, 1
        %s162 = smul.addr %s161, 8
        %s163 = scalar_lea.vmem [#allocation2], %s162
        // Predicated region
        $region29: #{tpu_custom_call.1} parent=27 // pred_check
          %p164 = pneg %p80
        $region30: #{tpu_custom_call.1} parent=27 // pred_check_branch
          %166 = sbr.rel (%p164) target = $region32
        $region31: #{tpu_custom_call.1} parent=27 // pred_region
          %167 = dma.done %s160, 128
        $region32: #{tpu_custom_call.1} parent=27 // pred_fallthru
          _
        %p168 = scmp.lt.s32.totalorder %s23, 1
        %s169 = scalar_select %p168, %s23, 1
        %s170 = scalar_lea.vmem %s0, %s169
        %p171 = pneg %p52
        %p172 = pneg %p49
        %s173 = sand.u32 %s67, 1
        %s174 = scalar_lea.sflag [#allocation3], %s173
        %s175 = sand.u32 %s67, 1
        %s176 = smul.addr %s175, 8
        %s177 = scalar_lea.vmem [#allocation2], %s176
        %p178 = pneg %p80
        %p179 = pneg %p77
        %p180 = pneg %p108
        %p181 = pneg %p105
        %s182 = sand.u32 %s95, 1
        %s183 = scalar_lea.sflag [#allocation4], %s182
        %s184 = sand.u32 %s95, 1
        %s185 = smul.addr %s184, 8
        %s186 = scalar_lea.vmem [#allocation5], %s185
        %p187 = scmp.lt.s32.totalorder %s23, 1
        %s188 = scalar_select %p187, %s23, 1
        %s189 = scalar_lea.vmem %s0, %s188
        %v190 = vld [vmem:[%s189] sm:$0x1]
        %v191 = vadd.f32 %v190, 0.7
        %v192 = vfloor.f32 %v191
        %v193 = vmul.f32 %v192, 1.4285715
        %v194 = vld [vmem:[%s163] sm:$0xff]
        %v196 = vlaneseq
        %v197 = vshrl.u32 %v196, 7
        %v198 = vsub.s32 0, %v197
        %v199 = vrot.slane %v193, %v198
        %200 = vset.pattern.permute.xlu0 0
        %201 = vperm.xlu0 %200, %v199
        %v202 = vpop.permute.xlu0 %201
        %v204 = vmul.f32 %v194, %v202
        %205 = vst [vmem:[%s186] sm:$0xff] %v204
        %s206 = sand.u32 %s95, 1
        %s207 = scalar_lea.sflag [#allocation4], %s206
        %s208 = sand.u32 %s95, 1
        %s209 = smul.addr %s208, 8
        %s210 = scalar_lea.vmem [#allocation5], %s209
        // Predicated region
        $region33: #{tpu_custom_call.1} parent=27 // pred_check
          %p211 = pneg %p105
        $region34: #{tpu_custom_call.1} parent=27 // pred_check_branch
          %213 = sbr.rel (%p211) target = $region36
        $region35: #{tpu_custom_call.1} parent=27 // pred_region
          %s215 = ssub.s32 128, 128
          %216 = vsyncadd %s207, %s215
          %s217 = sadd.s32 %s24, %s23
          %s218 = smul.addr %s217, 128
          %s219 = scalar_lea.hbm %s2, %s218
          %s221 = sshll.u32 %s210, 4
          %s222 = int_to_ptr.vmem [resolvable:$true] %s221
          %224 = dma.vmem_to_hbm [thread:$0]  %s222, 128, %s219, %s207
        $region36: #{tpu_custom_call.1} parent=27 // pred_fallthru
          _
      $region28: #{tpu_custom_call.1} parent=5 // pred_fallthru
        _
      %p225 = scmp.le.s32.totalorder 2, %s14
      // Predicated region
      $region37: #{tpu_custom_call.1} parent=5 // pred_check
        %p226 = pneg %p225
      $region38: #{tpu_custom_call.1} parent=5 // pred_check_branch
        %228 = sbr.rel (%p226) target = $region40
      $region39: #{tpu_custom_call.1} parent=5 // pred_region
        %s229 = ssub.s32 %s14, 2
        // Predicated region
        $region41: #{tpu_custom_call.1} parent=39 // pred_check
          %p230 = pneg %p111
        $region42: #{tpu_custom_call.1} parent=39 // pred_check_branch
          %232 = sbr.rel (%p230) target = $region44
        $region43: #{tpu_custom_call.1} parent=39 // pred_region
          %s233 = sand.u32 %s96, 1
          %s234 = scalar_lea.sflag [#allocation4], %s233
          %s235 = sand.u32 %s96, 1
          %s236 = smul.addr %s235, 8
          %s237 = scalar_lea.vmem [#allocation5], %s236
          %238 = dma.done %s234, 128
        $region44: #{tpu_custom_call.1} parent=39 // pred_fallthru
          _
      $region40: #{tpu_custom_call.1} parent=5 // pred_fallthru
        _
    $region6: #{tpu_custom_call.1} parent=1 // loop_footer
      %s18 = sadd.s32 1, %s14
    $region7: #{tpu_custom_call.1} parent=1 // loop_footer_branch
      %13 = sbr.rel target = $region3
    $region8: #{tpu_custom_call.1} parent=1 // loop_exit
      _
    %239 = vsyncpa [#allocation3], 1
    %s240 = scalar_lea.sflag [#allocation3], 1
    %241 = vsyncpa %s240, 1
    %242 = vsyncpa [#allocation4], 1
    %s243 = scalar_lea.sflag [#allocation4], 1
    %244 = vsyncpa %s243, 1

</llo_original>
